<compile_context>
chip_gen: v5e
topology: v5e:2x2
jax: 0.10.0
libtpu: 0.0.40
codegen_flags: <defaults>
</compile_context>

<pallas_src>
import functools

import jax
import jax.numpy as jnp
from jax.experimental import pallas as pl
from jax.experimental.pallas import tpu as pltpu


def _fused_kernel(adj_ref, feat_ref, o_ref, *, inv_m):
    """Whole-M path: one grid step handles block_b batch rows."""
    adj_sum = jnp.sum(adj_ref[...], axis=1)                  # [Bt, N, N]  (VPU)
    feat = feat_ref[...]                                      # [Bt, N, D]
    scaled = feat * inv_m                                     # fold 1/M into small tensor
    agg = jnp.einsum("bnk,bkd->bnd", adj_sum, scaled,
                     preferred_element_type=jnp.float32)      # [Bt, N, D] (MXU, f32 acc)
    o_ref[...] = (feat + agg).astype(o_ref.dtype)


def _mtiled_kernel(adj_ref, feat_ref, o_ref, acc_ref, *, inv_m):
    """Fallback path: M tiled on an 'arbitrary' reduction grid axis."""
    m = pl.program_id(1)

    @pl.when(m == 0)
    def _():
        acc_ref[...] = jnp.zeros_like(acc_ref)

    adj_sum = jnp.sum(adj_ref[...], axis=1)                   # [Bt, N, N]
    acc_ref[...] += jnp.einsum("bnk,bkd->bnd", adj_sum, feat_ref[...],
                               preferred_element_type=jnp.float32)

    @pl.when(m == pl.num_programs(1) - 1)
    def _():
        o_ref[...] = (feat_ref[...] + acc_ref[...] * inv_m).astype(o_ref.dtype)


def wls_linear_forward(node_feat, adj, *, vmem_budget_bytes=8 * 1024 * 1024):
    """out[b] = node_feat[b] + mean_m(adj[b, m] @ node_feat[b])."""
    B, N, D = node_feat.shape
    Ba, M, Na, Nk = adj.shape
    assert (Ba, Na, Nk) == (B, N, N), (adj.shape, node_feat.shape)

    inv_m = 1.0 / float(M)
    itemsize = 4  # compute path is f32
    # Double-buffered (pipeline) live bytes per batch row for each tensor group.
    adj_row_bytes = 2 * itemsize * M * N * N
    other_row_bytes = 2 * itemsize * 2 * N * D            # feat + out
    per_b_bytes = adj_row_bytes + other_row_bytes
    vmem_limit = 32 * 1024 * 1024

    if per_b_bytes <= vmem_budget_bytes:
        # ---- primary path: whole M per step, several batch rows per step ----
        block_b = max(1, min(B, vmem_budget_bytes // per_b_bytes))
        while B % block_b != 0:                            # avoid partial edge blocks
            block_b -= 1
        grid = (B // block_b,)
        return pl.pallas_call(
            functools.partial(_fused_kernel, inv_m=inv_m),
            out_shape=jax.ShapeDtypeStruct((B, N, D), node_feat.dtype),
            grid=grid,
            in_specs=[
                # Last two block dims equal full array dims -> layout-legal.
                pl.BlockSpec((block_b, M, N, N), lambda b: (b, 0, 0, 0)),
                pl.BlockSpec((block_b, N, D), lambda b: (b, 0, 0)),
            ],
            out_specs=pl.BlockSpec((block_b, N, D), lambda b: (b, 0, 0)),
            compiler_params=pltpu.CompilerParams(
                dimension_semantics=("parallel",),         # v7x: 2 TCs split the batch
                vmem_limit_bytes=vmem_limit,
            ),
        )(adj, node_feat)

    # ---- fallback path: a single row's full-M adj slab is too big; tile M ----
    block_b = 1
    block_m = 1
    for cand in range(M, 0, -1):
        if M % cand != 0:
            continue
        tile_bytes = 2 * itemsize * block_b * cand * N * N + other_row_bytes
        if tile_bytes <= vmem_budget_bytes or cand == 1:
            block_m = cand
            break
    grid = (B // block_b, M // block_m)
    return pl.pallas_call(
        functools.partial(_mtiled_kernel, inv_m=inv_m),
        out_shape=jax.ShapeDtypeStruct((B, N, D), node_feat.dtype),
        grid=grid,
        in_specs=[
            pl.BlockSpec((block_b, block_m, N, N), lambda b, m: (b, m, 0, 0)),
            pl.BlockSpec((block_b, N, D), lambda b, m: (b, 0, 0)),
        ],
        out_specs=pl.BlockSpec((block_b, N, D), lambda b, m: (b, 0, 0)),
        scratch_shapes=[pltpu.VMEM((block_b, N, D), jnp.float32)],
        compiler_params=pltpu.CompilerParams(
            dimension_semantics=("parallel", "arbitrary"),
            vmem_limit_bytes=vmem_limit,
        ),
    )(adj, node_feat)


if __name__ == "__main__":
    # Small deterministic example consistent with WLSLinearLayer.forward shapes.
    B, M, N, D = 4, 4, 16, 8

    key = jax.random.PRNGKey(0)
    k_x, k_adj = jax.random.split(key)
    node_feat = jax.random.normal(k_x, (B, N, D), jnp.float32)
    adj = (jax.random.uniform(k_adj, (B, M, N, N)) > 0.5).astype(jnp.float32)

    # Pure-JAX reference with the exact PyTorch op ordering (matmul -> mean -> add).
    ref = node_feat + jnp.mean(
        jnp.einsum("bmnk,bkd->bmnd", adj, node_feat), axis=1)

    # Primary (whole-M) path.
    out = jax.block_until_ready(wls_linear_forward(node_feat, adj))
    assert out.shape == (B, N, D), out.shape
    assert jnp.allclose(out, ref, atol=1e-5, rtol=1e-5), float(
        jnp.max(jnp.abs(out - ref)))

    # Force and verify the M-tiled fallback path (tiny artificial VMEM budget).
    out_mt = jax.block_until_ready(
        wls_linear_forward(node_feat, adj, vmem_budget_bytes=8192))
    assert jnp.allclose(out_mt, ref, atol=1e-5, rtol=1e-5), float(
        jnp.max(jnp.abs(out_mt - ref)))

    print("KERNEL_OK")
</pallas_src>

<mosaic_0001>
module attributes {stable_mosaic.version = 11 : i64} {
  func.func @_fused_kernel(%arg0: i32, %arg1: memref<4x4x16x16xf32, #tpu.memory_space<vmem>>, %arg2: memref<4x16x8xf32, #tpu.memory_space<vmem>>, %arg3: memref<4x16x8xf32, #tpu.memory_space<vmem>>) attributes {dimension_semantics = [#tpu.dimension_semantics<parallel>], iteration_bounds = array<i64: 1>, scalar_prefetch = 0 : i64, scratch_operands = 0 : i64, tpu.core_type = #tpu.core_type<tc>, window_params = [{transform_indices = @transform_0, window_bounds = array<i64: 4, 4, 16, 16>}, {transform_indices = @transform_1, window_bounds = array<i64: 4, 16, 8>}, {transform_indices = @transform_2, window_bounds = array<i64: 4, 16, 8>}]} {
    %c0 = arith.constant 0 : index
    %c0_0 = arith.constant 0 : index
    %c0_1 = arith.constant 0 : index
    %c0_2 = arith.constant 0 : index
    %0 = vector.load %arg1[%c0, %c0_0, %c0_1, %c0_2] : memref<4x4x16x16xf32, #tpu.memory_space<vmem>>, vector<4x4x16x16xf32>
    %cst = arith.constant dense<0.000000e+00> : vector<4x16x16xf32>
    %1 = vector.multi_reduction <add>, %0, %cst [1] : vector<4x4x16x16xf32> to vector<4x16x16xf32>
    %c0_3 = arith.constant 0 : index
    %c0_4 = arith.constant 0 : index
    %c0_5 = arith.constant 0 : index
    %2 = vector.load %arg2[%c0_3, %c0_4, %c0_5] : memref<4x16x8xf32, #tpu.memory_space<vmem>>, vector<4x16x8xf32>
    %cst_6 = arith.constant 2.500000e-01 : f32
    %3 = vector.broadcast %cst_6 : f32 to vector<4x16x8xf32>
    %4 = arith.mulf %2, %3 : vector<4x16x8xf32>
    "tpu.trace_start"() <{level = 10 : i32, message = "bnk,bkd->bnd"}> : () -> ()
    %cst_7 = arith.constant dense<0.000000e+00> : vector<4x16x8xf32>
    %5 = tpu.matmul %1, %4, %cst_7 {dimension_numbers = #tpu.dot_dimension_numbers<[2], [1], [1], [2], [0, 0, 0, 1, 1, 2], [0], [0]>} : vector<4x16x16xf32>, vector<4x16x8xf32>, vector<4x16x8xf32> -> vector<4x16x8xf32>
    "tpu.trace_stop"() : () -> ()
    %6 = arith.addf %2, %5 : vector<4x16x8xf32>
    %c0_8 = arith.constant 0 : index
    %c0_9 = arith.constant 0 : index
    %c0_10 = arith.constant 0 : index
    %7 = vector.load %arg3[%c0_8, %c0_9, %c0_10] : memref<4x16x8xf32, #tpu.memory_space<vmem>>, vector<4x16x8xf32>
    tpu.vector_store %arg3[%c0_8, %c0_9, %c0_10], %6 {strides = array<i32>} : memref<4x16x8xf32, #tpu.memory_space<vmem>>, vector<4x16x8xf32>,
    return
  }
  func.func @transform_0(%arg0: i32) -> (i32, i32, i32, i32) {
    %c0_i32 = arith.constant 0 : i32
    %c0_i32_0 = arith.constant 0 : i32
    %c0_i32_1 = arith.constant 0 : i32
    %c0_i32_2 = arith.constant 0 : i32
    return %arg0, %c0_i32, %c0_i32_0, %c0_i32_1 : i32, i32, i32, i32
  }
  func.func @transform_1(%arg0: i32) -> (i32, i32, i32) {
    %c0_i32 = arith.constant 0 : i32
    %c0_i32_0 = arith.constant 0 : i32
    %c0_i32_1 = arith.constant 0 : i32
    return %arg0, %c0_i32, %c0_i32_0 : i32, i32, i32
  }
  func.func @transform_2(%arg0: i32) -> (i32, i32, i32) {
    %c0_i32 = arith.constant 0 : i32
    %c0_i32_0 = arith.constant 0 : i32
    %c0_i32_1 = arith.constant 0 : i32
    return %arg0, %c0_i32, %c0_i32_0 : i32, i32, i32
  }
}

</mosaic_0001>

<llo_original>
// kernel: tpu_custom_call.1
$region0: #{tpu_custom_call.1}
  #allocation0 [shape = 'u32[]', space=smem, size = 0x4, offset = 0x4, fixed_abs, tag = 'smem constant byte address 0x4 - core index']
  #allocation1 [shape = 'u32[72,128]{1,0:T(1,128)}', space=vmem, size = 0x9000, scoped, tag = 'internal scratch']
  %s0 = inlined_call_operand.hbm [shape: f32[4,4,16,16], index: 0, kind: input, shape index: {}]
  %s1 = inlined_call_operand.vmem [shape: f32[4,16,8], index: 1, kind: input, shape index: {}]
  %s2 = inlined_call_operand.vmem [shape: f32[4,16,8], index: 2, kind: output, shape index: {}]
  %s3 = sld [smem:[#allocation0]]
  $region22: #{tpu_custom_call.1} parent=0
    _
  %s5 = ssub.s32 1, %s3
  %s6 = scalar_select 0, %s5, %s3
  $region1: #{tpu_custom_call.1} parent=0
    #allocation2 [shape = 'u8[131072]{0}', space=vmem, size = 0x20000, scoped, tag = 'input window, operand 0, single buffered']
    #allocation3 [shape = 's32[1]{0}', space=sflag, size = 0x4, scoped, tag = 'scoped memory for tpu_custom_call.1']
    %7 = vsyncpa [#allocation3], 0
    // Predicated region
    $region2: #{tpu_custom_call.1} parent=1 // pred_check
      _
    $region3: #{tpu_custom_call.1} parent=1 // pred_check_branch
      %9 = sbr.rel (0) target = $region5
    $region4: #{tpu_custom_call.1} parent=1 // pred_region
      %11 = vsyncadd [#allocation3], 0
      %s12 = sshll.u32 %s0, 4
      %s13 = int_to_ptr.hbm [resolvable:$true] %s12
      %s14 = sshll.u32 [#allocation2], 4
      %s15 = int_to_ptr.vmem [resolvable:$true] %s14
      %20 = dma.hbm_to_vmem [thread:$0]  %s13, 4096, %s15, [#allocation3], 128, 128, 8
    $region5: #{tpu_custom_call.1} parent=1 // pred_fallthru
      _
    // Predicated region
    $region6: #{tpu_custom_call.1} parent=1 // pred_check
      _
    $region7: #{tpu_custom_call.1} parent=1 // pred_check_branch
      %22 = sbr.rel (0) target = $region9
    $region8: #{tpu_custom_call.1} parent=1 // pred_region
      _
    $region9: #{tpu_custom_call.1} parent=1 // pred_fallthru
      _
    // Predicated region
    $region10: #{tpu_custom_call.1} parent=1 // pred_check
      _
    $region11: #{tpu_custom_call.1} parent=1 // pred_check_branch
      %24 = sbr.rel (0) target = $region13
    $region12: #{tpu_custom_call.1} parent=1 // pred_region
      %26 = dma.done [#allocation3], 4096
    $region13: #{tpu_custom_call.1} parent=1 // pred_fallthru
      _
    %v27 = vld [vmem:[#allocation2] sm:$0xff]
    %v28 = vld [vmem:[#allocation2 + $0x8] sm:$0xff]
    %v29 = vld [vmem:[#allocation2 + $0x10] sm:$0xff]
    %v30 = vld [vmem:[#allocation2 + $0x18] sm:$0xff]
    %v31 = vld [vmem:[#allocation2 + $0x20] sm:$0xff]
    %v32 = vld [vmem:[#allocation2 + $0x28] sm:$0xff]
    %v33 = vld [vmem:[#allocation2 + $0x30] sm:$0xff]
    %v34 = vld [vmem:[#allocation2 + $0x38] sm:$0xff]
    %v35 = vld [vmem:[#allocation2 + $0x40] sm:$0xff]
    %v36 = vld [vmem:[#allocation2 + $0x48] sm:$0xff]
    %v37 = vld [vmem:[#allocation2 + $0x50] sm:$0xff]
    %v38 = vld [vmem:[#allocation2 + $0x58] sm:$0xff]
    %v39 = vld [vmem:[#allocation2 + $0x60] sm:$0xff]
    %v40 = vld [vmem:[#allocation2 + $0x68] sm:$0xff]
    %v41 = vld [vmem:[#allocation2 + $0x70] sm:$0xff]
    %v42 = vld [vmem:[#allocation2 + $0x78] sm:$0xff]
    %v43 = vld [vmem:[#allocation2 + $0x80] sm:$0xff]
    %v44 = vld [vmem:[#allocation2 + $0x88] sm:$0xff]
    %v45 = vld [vmem:[#allocation2 + $0x90] sm:$0xff]
    %v46 = vld [vmem:[#allocation2 + $0x98] sm:$0xff]
    %v47 = vld [vmem:[#allocation2 + $0xa0] sm:$0xff]
    %v48 = vld [vmem:[#allocation2 + $0xa8] sm:$0xff]
    %v49 = vld [vmem:[#allocation2 + $0xb0] sm:$0xff]
    %v50 = vld [vmem:[#allocation2 + $0xb8] sm:$0xff]
    %v51 = vld [vmem:[#allocation2 + $0xc0] sm:$0xff]
    %v52 = vld [vmem:[#allocation2 + $0xc8] sm:$0xff]
    %v53 = vld [vmem:[#allocation2 + $0xd0] sm:$0xff]
    %v54 = vld [vmem:[#allocation2 + $0xd8] sm:$0xff]
    %v55 = vld [vmem:[#allocation2 + $0xe0] sm:$0xff]
    %v56 = vld [vmem:[#allocation2 + $0xe8] sm:$0xff]
    %v57 = vld [vmem:[#allocation2 + $0xf0] sm:$0xff]
    %v58 = vld [vmem:[#allocation2 + $0xf8] sm:$0xff]
    %vm59 = vcmask 130048
    %v60 = vsel %vm59, %v27, 0.0
    %v61 = vsel %vm59, %v29, 0.0
    %v62 = vadd.f32 %v60, %v61
    %v63 = vsel %vm59, %v31, 0.0
    %v64 = vadd.f32 %v62, %v63
    %v65 = vsel %vm59, %v33, 0.0
    %v66 = vadd.f32 %v64, %v65
    %v67 = vsel %vm59, %v28, 0.0
    %v68 = vsel %vm59, %v30, 0.0
    %v69 = vadd.f32 %v67, %v68
    %v70 = vsel %vm59, %v32, 0.0
    %v71 = vadd.f32 %v69, %v70
    %v72 = vsel %vm59, %v34, 0.0
    %v73 = vadd.f32 %v71, %v72
    %v74 = vsel %vm59, %v35, 0.0
    %v75 = vsel %vm59, %v37, 0.0
    %v76 = vadd.f32 %v74, %v75
    %v77 = vsel %vm59, %v39, 0.0
    %v78 = vadd.f32 %v76, %v77
    %v79 = vsel %vm59, %v41, 0.0
    %v80 = vadd.f32 %v78, %v79
    %v81 = vsel %vm59, %v36, 0.0
    %v82 = vsel %vm59, %v38, 0.0
    %v83 = vadd.f32 %v81, %v82
    %v84 = vsel %vm59, %v40, 0.0
    %v85 = vadd.f32 %v83, %v84
    %v86 = vsel %vm59, %v42, 0.0
    %v87 = vadd.f32 %v85, %v86
    %v88 = vsel %vm59, %v43, 0.0
    %v89 = vsel %vm59, %v45, 0.0
    %v90 = vadd.f32 %v88, %v89
    %v91 = vsel %vm59, %v47, 0.0
    %v92 = vadd.f32 %v90, %v91
    %v93 = vsel %vm59, %v49, 0.0
    %v94 = vadd.f32 %v92, %v93
    %v95 = vsel %vm59, %v44, 0.0
    %v96 = vsel %vm59, %v46, 0.0
    %v97 = vadd.f32 %v95, %v96
    %v98 = vsel %vm59, %v48, 0.0
    %v99 = vadd.f32 %v97, %v98
    %v100 = vsel %vm59, %v50, 0.0
    %v101 = vadd.f32 %v99, %v100
    %v102 = vsel %vm59, %v51, 0.0
    %v103 = vsel %vm59, %v53, 0.0
    %v104 = vadd.f32 %v102, %v103
    %v105 = vsel %vm59, %v55, 0.0
    %v106 = vadd.f32 %v104, %v105
    %v107 = vsel %vm59, %v57, 0.0
    %v108 = vadd.f32 %v106, %v107
    %v109 = vsel %vm59, %v52, 0.0
    %v110 = vsel %vm59, %v54, 0.0
    %v111 = vadd.f32 %v109, %v110
    %v112 = vsel %vm59, %v56, 0.0
    %v113 = vadd.f32 %v111, %v112
    %v114 = vsel %vm59, %v58, 0.0
    %v115 = vadd.f32 %v113, %v114
    %v116 = vld [vmem:[%s1] sm:$0xff]
    %v117 = vld [vmem:[%s1 + $0x8] sm:$0xff]
    %v118 = vld [vmem:[%s1 + $0x10] sm:$0xff]
    %v119 = vld [vmem:[%s1 + $0x18] sm:$0xff]
    %v120 = vld [vmem:[%s1 + $0x20] sm:$0xff]
    %v121 = vld [vmem:[%s1 + $0x28] sm:$0xff]
    %v122 = vld [vmem:[%s1 + $0x30] sm:$0xff]
    %v123 = vld [vmem:[%s1 + $0x38] sm:$0xff]
    %v124 = vmul.f32 %v116, 0.25
    %v125 = vmul.f32 %v117, 0.25
    %v126 = vmul.f32 %v118, 0.25
    %v127 = vmul.f32 %v119, 0.25
    %v128 = vmul.f32 %v120, 0.25
    %v129 = vmul.f32 %v121, 0.25
    %v130 = vmul.f32 %v122, 0.25
    %v131 = vmul.f32 %v123, 0.25
    %v133 = vsel %vm59, %v66, 0
    %v136 = vsel %vm59, %v73, 0
    %138 = vmatpush.msra.mxu0 0.0
    %139 = vmatpush.msra.mxu0 0.0
    %140 = vmatpush.msra.mxu0 0.0
    %141 = vmatpush.msra.mxu0 0.0
    %142 = vmatpush.msra.mxu0 0.0
    %143 = vmatpush.msra.mxu0 0.0
    %144 = vmatpush.msra.mxu0 0.0
    %145 = vmatpush.msra.mxu0 0.0
    %146 = vmatpush.msra.mxu0 0.0
    %147 = vmatpush.msra.mxu0 0.0
    %148 = vmatpush.msra.mxu0 0.0
    %149 = vmatpush.msra.mxu0 0.0
    %150 = vmatpush.msra.mxu0 0.0
    %151 = vmatpush.msra.mxu0 0.0
    %152 = vmatpush.msra.mxu0 %v125
    %153 = vmatpush.msra.mxu0 %v124
    %154 = vmatmul.f32.gmra.mxu0 %v133
    %v155 = vpop.f32.mrf.mxu0
    %v156 = vadd.f32 0.0, %v155
    %157 = vmatmul.f32.gmra.mxu0 %v136
    %v158 = vpop.f32.mrf.mxu0
    %v159 = vadd.f32 0.0, %v158
    %160 = vdwg.mxu0
    %v162 = vsel %vm59, %v80, 0
    %v165 = vsel %vm59, %v87, 0
    %167 = vmatpush.msra.mxu0 0.0
    %168 = vmatpush.msra.mxu0 0.0
    %169 = vmatpush.msra.mxu0 0.0
    %170 = vmatpush.msra.mxu0 0.0
    %171 = vmatpush.msra.mxu0 0.0
    %172 = vmatpush.msra.mxu0 0.0
    %173 = vmatpush.msra.mxu0 0.0
    %174 = vmatpush.msra.mxu0 0.0
    %175 = vmatpush.msra.mxu0 0.0
    %176 = vmatpush.msra.mxu0 0.0
    %177 = vmatpush.msra.mxu0 0.0
    %178 = vmatpush.msra.mxu0 0.0
    %179 = vmatpush.msra.mxu0 0.0
    %180 = vmatpush.msra.mxu0 0.0
    %181 = vmatpush.msra.mxu0 %v127
    %182 = vmatpush.msra.mxu0 %v126
    %183 = vmatmul.f32.gmra.mxu0 %v162
    %v184 = vpop.f32.mrf.mxu0
    %v185 = vadd.f32 0.0, %v184
    %186 = vmatmul.f32.gmra.mxu0 %v165
    %v187 = vpop.f32.mrf.mxu0
    %v188 = vadd.f32 0.0, %v187
    %189 = vdwg.mxu0
    %v191 = vsel %vm59, %v94, 0
    %v194 = vsel %vm59, %v101, 0
    %196 = vmatpush.msra.mxu0 0.0
    %197 = vmatpush.msra.mxu0 0.0
    %198 = vmatpush.msra.mxu0 0.0
    %199 = vmatpush.msra.mxu0 0.0
    %200 = vmatpush.msra.mxu0 0.0
    %201 = vmatpush.msra.mxu0 0.0
    %202 = vmatpush.msra.mxu0 0.0
    %203 = vmatpush.msra.mxu0 0.0
    %204 = vmatpush.msra.mxu0 0.0
    %205 = vmatpush.msra.mxu0 0.0
    %206 = vmatpush.msra.mxu0 0.0
    %207 = vmatpush.msra.mxu0 0.0
    %208 = vmatpush.msra.mxu0 0.0
    %209 = vmatpush.msra.mxu0 0.0
    %210 = vmatpush.msra.mxu0 %v129
    %211 = vmatpush.msra.mxu0 %v128
    %212 = vmatmul.f32.gmra.mxu0 %v191
    %v213 = vpop.f32.mrf.mxu0
    %v214 = vadd.f32 0.0, %v213
    %215 = vmatmul.f32.gmra.mxu0 %v194
    %v216 = vpop.f32.mrf.mxu0
    %v217 = vadd.f32 0.0, %v216
    %218 = vdwg.mxu0
    %v220 = vsel %vm59, %v108, 0
    %v223 = vsel %vm59, %v115, 0
    %225 = vmatpush.msra.mxu0 0.0
    %226 = vmatpush.msra.mxu0 0.0
    %227 = vmatpush.msra.mxu0 0.0
    %228 = vmatpush.msra.mxu0 0.0
    %229 = vmatpush.msra.mxu0 0.0
    %230 = vmatpush.msra.mxu0 0.0
    %231 = vmatpush.msra.mxu0 0.0
    %232 = vmatpush.msra.mxu0 0.0
    %233 = vmatpush.msra.mxu0 0.0
    %234 = vmatpush.msra.mxu0 0.0
    %235 = vmatpush.msra.mxu0 0.0
    %236 = vmatpush.msra.mxu0 0.0
    %237 = vmatpush.msra.mxu0 0.0
    %238 = vmatpush.msra.mxu0 0.0
    %239 = vmatpush.msra.mxu0 %v131
    %240 = vmatpush.msra.mxu0 %v130
    %241 = vmatmul.f32.gmra.mxu0 %v220
    %v242 = vpop.f32.mrf.mxu0
    %v243 = vadd.f32 0.0, %v242
    %244 = vmatmul.f32.gmra.mxu0 %v223
    %v245 = vpop.f32.mrf.mxu0
    %v246 = vadd.f32 0.0, %v245
    %247 = vdwg.mxu0
    %v248 = vadd.f32 %v116, %v156
    %v249 = vadd.f32 %v117, %v159
    %v250 = vadd.f32 %v118, %v185
    %v251 = vadd.f32 %v119, %v188
    %v252 = vadd.f32 %v120, %v214
    %v253 = vadd.f32 %v121, %v217
    %v254 = vadd.f32 %v122, %v243
    %v255 = vadd.f32 %v123, %v246
    %vm256 = vcmask 64512
    %257 = vst.msk [vmem:[%s2] sm:$0xff] %vm256, %v248
    %258 = vst.msk [vmem:[%s2 + $0x8] sm:$0xff] %vm256, %v249
    %259 = vst.msk [vmem:[%s2 + $0x10] sm:$0xff] %vm256, %v250
    %260 = vst.msk [vmem:[%s2 + $0x18] sm:$0xff] %vm256, %v251
    %261 = vst.msk [vmem:[%s2 + $0x20] sm:$0xff] %vm256, %v252
    %262 = vst.msk [vmem:[%s2 + $0x28] sm:$0xff] %vm256, %v253
    %263 = vst.msk [vmem:[%s2 + $0x30] sm:$0xff] %vm256, %v254
    %264 = vst.msk [vmem:[%s2 + $0x38] sm:$0xff] %vm256, %v255
    // Predicated region
    $region14: #{tpu_custom_call.1} parent=1 // pred_check
      _
    $region15: #{tpu_custom_call.1} parent=1 // pred_check_branch
      %266 = sbr.rel (0) target = $region17
    $region16: #{tpu_custom_call.1} parent=1 // pred_region
      _
    $region17: #{tpu_custom_call.1} parent=1 // pred_fallthru
      _
    // Predicated region
    $region18: #{tpu_custom_call.1} parent=1 // pred_check
      _
    $region19: #{tpu_custom_call.1} parent=1 // pred_check_branch
      %268 = sbr.rel (0) target = $region21
    $region20: #{tpu_custom_call.1} parent=1 // pred_region
      _
    $region21: #{tpu_custom_call.1} parent=1 // pred_fallthru
      _
    %269 = vsyncpa [#allocation3], 1

</llo_original>
